<compile_context>
chip_gen: v5e
topology: v5e:2x2
jax: 0.10.0
libtpu: 0.0.40
codegen_flags: <defaults>
</compile_context>

<pallas_src>
import functools

import numpy as np

import jax
import jax.numpy as jnp
from jax.experimental import pallas as pl
from jax.experimental.pallas import tpu as pltpu


def _yolo_kernel(add_ref, anc_ref, x_ref, o_ref, stage_ref, *, stride, bn):
    # add_ref:   (2, GG)      f32  grid-cell x / y indices (unscaled)
    # anc_ref:   (N, 2)       f32  raw anchor (w, h) in pixels per fused row
    # x_ref:     (bn, C5, GG)      raw logits (native dtype), lane-dense on GG
    # o_ref:     (bn, GG, C5)      decoded predictions
    # stage_ref: (bn, C5, GG) f32  VMEM staging for the pre-transpose value

    # Full-tile sigmoid, lane-dense.  Rows >= 4 (objectness + classes) are
    # final after this store; rows 0:4 are overwritten below.
    stage_ref[...] = jax.nn.sigmoid(x_ref[...].astype(jnp.float32))

    # x / y: (sigmoid + cell) * stride.  Re-read the already-sigmoided rows
    # from the staging buffer (2-sublane masked load/store, no relayout).
    sxy = stage_ref[:, 0:2, :]
    stage_ref[:, 0:2, :] = (sxy + add_ref[...]) * stride

    # w / h: exp only on these two sublanes; raw anchors already carry the
    # stride factor (scaled_anchors * stride == anchors).
    row0 = pl.program_id(0) * bn
    if bn % 8 == 0:
        row0 = pl.multiple_of(row0, 8)
    anc = anc_ref[pl.ds(row0, bn), :]                     # (bn, 2)
    pwh = x_ref[:, 2:4, :].astype(jnp.float32)            # (bn, 2, GG)
    stage_ref[:, 2:4, :] = jnp.exp(pwh) * anc[:, :, None]

    # Single minor-dim transpose (XLU) into the PyTorch output layout so the
    # wrapper only needs a free reshape (no extra HBM round trip).
    o_ref[...] = jnp.transpose(stage_ref[...], (0, 2, 1)).astype(o_ref.dtype)


def _ceil_to(v, m):
    return -(-int(v) // int(m)) * int(m)


def _sublane_multiple(itemsize):
    return {4: 8, 2: 16, 1: 32}.get(int(itemsize), 8)


def _vmem_ceiling_bytes():
    try:
        cap = int(getattr(pltpu.get_tpu_info(), "vmem_capacity_bytes", 0))
    except Exception:
        cap = 0
    if cap <= 0:
        cap = 64 << 20          # conservative default (v7x physical VMEM)
    return (cap * 3) // 4       # stay well below physical VMEM


def _pick_row_block(n_rows, footprint, budget, min_steps=4):
    """Largest divisor of n_rows whose padded, double-buffered footprint fits
    the budget while keeping >= min_steps grid steps (pipeline depth /
    v7x megacore)."""
    best = 1
    for d in range(1, n_rows + 1):
        if n_rows % d:
            continue
        if footprint(d) > budget:
            break
        if n_rows // d < min(min_steps, n_rows):
            break
        best = d
    return best


def yolo_layer_forward(x_nchw, anchors, num_classes, img_dim,
                       out_dtype=jnp.float32):
    B, C, g, g2 = x_nchw.shape
    assert g == g2
    nA = len(anchors)
    C5 = num_classes + 5
    assert C == nA * C5
    GG = g * g
    N = B * nA
    stride = float(img_dim) / float(g)

    # (B, nA*C5, g, g) -> (B*nA, C5, g*g): pure reshape, no data movement.
    xr = x_nchw.reshape(N, C5, GG)

    # Grid-cell indices, flattened row-major (idx = gy*g + gx).
    idx = np.arange(GG)
    add = jnp.asarray(np.stack([idx % g, idx // g], 0).astype(np.float32))  # (2, GG)
    # Raw anchors replicated per fused (batch, anchor) row.
    anc = jnp.asarray(np.tile(np.asarray(anchors, np.float32), (B, 1)))     # (N, 2)

    out_dtype = jnp.dtype(out_dtype)
    in_dt = xr.dtype

    # ---- padding-aware VMEM footprint per fused row ----
    lane_gg = _ceil_to(GG, 128)
    in_row = (_ceil_to(C5, _sublane_multiple(in_dt.itemsize))
              * lane_gg * in_dt.itemsize)
    stage_row = _ceil_to(C5, 8) * lane_gg * 4
    out_row = (_ceil_to(GG, _sublane_multiple(out_dtype.itemsize))
               * _ceil_to(C5, 128) * out_dtype.itemsize)
    add_bytes = 2 * _ceil_to(2, 8) * lane_gg * 4                 # double-buffered
    anc_bytes = 2 * _ceil_to(N, 8) * _ceil_to(2, 128) * 4

    def footprint(bn):
        # inputs & outputs double-buffered by the pipeline; scratch single.
        return bn * (2 * in_row + 2 * out_row + stage_row) + add_bytes + anc_bytes

    ceiling = _vmem_ceiling_bytes()
    block_budget = min(ceiling // 2, 32 << 20)
    bn = _pick_row_block(N, footprint, block_budget)

    need = footprint(bn)
    vmem_limit = int(min(ceiling, max(32 << 20, need + (4 << 20))))

    kernel = functools.partial(_yolo_kernel, stride=stride, bn=bn)
    out = pl.pallas_call(
        kernel,
        out_shape=jax.ShapeDtypeStruct((N, GG, C5), out_dtype),
        grid_spec=pltpu.PrefetchScalarGridSpec(
            num_scalar_prefetch=0,
            grid=(N // bn,),
            in_specs=[
                pl.BlockSpec((2, GG), lambda i: (0, 0)),          # DMA'd once
                pl.BlockSpec((N, 2), lambda i: (0, 0)),           # DMA'd once
                pl.BlockSpec((bn, C5, GG), lambda i: (i, 0, 0)),
            ],
            out_specs=pl.BlockSpec((bn, GG, C5), lambda i: (i, 0, 0)),
            scratch_shapes=[pltpu.VMEM((bn, C5, GG), jnp.float32)],
        ),
        compiler_params=pltpu.CompilerParams(
            dimension_semantics=("parallel",),
            vmem_limit_bytes=vmem_limit),
    )(add, anc, xr)

    # (B*nA, GG, C5) -> (B, nA*g*g, 5+nc): contiguous reshape, free.
    output = out.reshape(B, nA * GG, C5)
    return output, 0


def _reference(x_nchw, anchors, num_classes, img_dim):
    """Pure-JAX replica of the PyTorch forward (targets=None) for checking."""
    B, C, g, _ = x_nchw.shape
    nA = len(anchors)
    C5 = num_classes + 5
    stride = img_dim / g
    pred = x_nchw.reshape(B, nA, C5, g, g).transpose(0, 1, 3, 4, 2)
    pred = pred.astype(jnp.float32)
    sx = jax.nn.sigmoid(pred[..., 0])
    sy = jax.nn.sigmoid(pred[..., 1])
    w = pred[..., 2]
    h = pred[..., 3]
    conf = jax.nn.sigmoid(pred[..., 4])
    cls_ = jax.nn.sigmoid(pred[..., 5:])
    gx = jnp.arange(g, dtype=jnp.float32).reshape(1, 1, 1, g)
    gy = jnp.arange(g, dtype=jnp.float32).reshape(1, 1, g, 1)
    anc = jnp.asarray(anchors, jnp.float32) / stride
    aw = anc[:, 0].reshape(1, nA, 1, 1)
    ah = anc[:, 1].reshape(1, nA, 1, 1)
    bx = sx + gx
    by = sy + gy
    bw = jnp.exp(w) * aw
    bh = jnp.exp(h) * ah
    boxes = jnp.stack([bx, by, bw, bh], -1).reshape(B, -1, 4) * stride
    return jnp.concatenate(
        [boxes, conf.reshape(B, -1, 1), cls_.reshape(B, -1, num_classes)], -1)


if __name__ == "__main__":
    # small, deterministic config
    num_classes = 3
    anchors = [(10.0, 13.0), (16.0, 30.0), (33.0, 23.0)]
    nA = len(anchors)
    B, g = 2, 16
    img_dim = 64                      # stride = img_dim / g = 4
    C = nA * (num_classes + 5)        # 24

    key = jax.random.PRNGKey(0)
    x = jax.random.normal(key, (B, C, g, g), dtype=jnp.float32)

    out, loss = yolo_layer_forward(x, anchors, num_classes, img_dim)
    out = jax.block_until_ready(out)

    ref = _reference(x, anchors, num_classes, img_dim)
    assert out.shape == (B, nA * g * g, num_classes + 5)
    assert jnp.allclose(out, ref, atol=1e-5, rtol=1e-5), "mismatch vs reference"
    assert loss == 0

    print("KERNEL_OK")
</pallas_src>

<mosaic_0001>
module attributes {stable_mosaic.version = 11 : i64} {
  func.func @_yolo_kernel(%arg0: i32, %arg1: memref<2x256xf32, #tpu.memory_space<vmem>>, %arg2: memref<6x2xf32, #tpu.memory_space<vmem>>, %arg3: memref<1x8x256xf32, #tpu.memory_space<vmem>>, %arg4: memref<1x256x8xf32, #tpu.memory_space<vmem>>, %arg5: memref<1x8x256xf32, #tpu.memory_space<vmem>>) attributes {dimension_semantics = [#tpu.dimension_semantics<parallel>], iteration_bounds = array<i64: 6>, scalar_prefetch = 0 : i64, scratch_operands = 1 : i64, tpu.core_type = #tpu.core_type<tc>, window_params = [{pipeline_mode = #tpu.pipeline_mode<synchronous>, transform_indices = @transform_0, window_bounds = array<i64: 2, 256>}, {pipeline_mode = #tpu.pipeline_mode<synchronous>, transform_indices = @transform_1, window_bounds = array<i64: 6, 2>}, {transform_indices = @transform_2, window_bounds = array<i64: 1, 8, 256>}, {transform_indices = @transform_3, window_bounds = array<i64: 1, 256, 8>}]} {
    %c0 = arith.constant 0 : index
    %c0_0 = arith.constant 0 : index
    %c0_1 = arith.constant 0 : index
    %0 = vector.load %arg3[%c0, %c0_0, %c0_1] : memref<1x8x256xf32, #tpu.memory_space<vmem>>, vector<1x8x256xf32>
    %1 = arith.negf %0 : vector<1x8x256xf32>
    %2 = math.exp %1 : vector<1x8x256xf32>
    %cst = arith.constant 1.000000e+00 : f32
    %3 = vector.broadcast %cst : f32 to vector<1x8x256xf32>
    %4 = arith.addf %3, %2 : vector<1x8x256xf32>
    %5 = arith.divf %3, %4 : vector<1x8x256xf32>
    %c0_2 = arith.constant 0 : index
    %c0_3 = arith.constant 0 : index
    %c0_4 = arith.constant 0 : index
    %6 = vector.load %arg5[%c0_2, %c0_3, %c0_4] : memref<1x8x256xf32, #tpu.memory_space<vmem>>, vector<1x8x256xf32>
    tpu.vector_store %arg5[%c0_2, %c0_3, %c0_4], %5 {strides = array<i32>} : memref<1x8x256xf32, #tpu.memory_space<vmem>>, vector<1x8x256xf32>,
    %c0_5 = arith.constant 0 : index
    %c0_6 = arith.constant 0 : index
    %c0_7 = arith.constant 0 : index
    %7 = vector.load %arg5[%c0_5, %c0_6, %c0_7] : memref<1x8x256xf32, #tpu.memory_space<vmem>>, vector<1x2x256xf32>
    %c0_8 = arith.constant 0 : index
    %c0_9 = arith.constant 0 : index
    %8 = vector.load %arg1[%c0_8, %c0_9] : memref<2x256xf32, #tpu.memory_space<vmem>>, vector<2x256xf32>
    %9 = vector.shape_cast %8 : vector<2x256xf32> to vector<1x2x256xf32>
    %10 = arith.addf %7, %9 : vector<1x2x256xf32>
    %cst_10 = arith.constant 4.000000e+00 : f32
    %11 = vector.broadcast %cst_10 : f32 to vector<1x2x256xf32>
    %12 = arith.mulf %10, %11 : vector<1x2x256xf32>
    %c0_11 = arith.constant 0 : index
    %c0_12 = arith.constant 0 : index
    %c0_13 = arith.constant 0 : index
    %13 = vector.load %arg5[%c0_11, %c0_12, %c0_13] : memref<1x8x256xf32, #tpu.memory_space<vmem>>, vector<1x2x256xf32>
    tpu.vector_store %arg5[%c0_11, %c0_12, %c0_13], %12 {strides = array<i32>} : memref<1x8x256xf32, #tpu.memory_space<vmem>>, vector<1x2x256xf32>,
    %c1_i32 = arith.constant 1 : i32
    %14 = arith.muli %arg0, %c1_i32 : i32
    %15 = arith.index_cast %14 : i32 to index
    %c0_14 = arith.constant 0 : index
    %16 = vector.load %arg2[%15, %c0_14] : memref<6x2xf32, #tpu.memory_space<vmem>>, vector<1x2xf32>
    %c0_15 = arith.constant 0 : index
    %c2 = arith.constant 2 : index
    %c0_16 = arith.constant 0 : index
    %17 = vector.load %arg3[%c0_15, %c2, %c0_16] : memref<1x8x256xf32, #tpu.memory_space<vmem>>, vector<1x2x256xf32>
    %18 = math.exp %17 : vector<1x2x256xf32>
    %19 = vector.shape_cast %16 : vector<1x2xf32> to vector<1x2x1xf32>
    %20 = vector.broadcast %19 : vector<1x2x1xf32> to vector<1x2x256xf32>
    %21 = arith.mulf %18, %20 : vector<1x2x256xf32>
    %c0_17 = arith.constant 0 : index
    %c2_18 = arith.constant 2 : index
    %c0_19 = arith.constant 0 : index
    %22 = vector.load %arg5[%c0_17, %c2_18, %c0_19] : memref<1x8x256xf32, #tpu.memory_space<vmem>>, vector<1x2x256xf32>
    tpu.vector_store %arg5[%c0_17, %c2_18, %c0_19], %21 {strides = array<i32>} : memref<1x8x256xf32, #tpu.memory_space<vmem>>, vector<1x2x256xf32>,
    %c0_20 = arith.constant 0 : index
    %c0_21 = arith.constant 0 : index
    %c0_22 = arith.constant 0 : index
    %23 = vector.load %arg5[%c0_20, %c0_21, %c0_22] : memref<1x8x256xf32, #tpu.memory_space<vmem>>, vector<1x8x256xf32>
    %24 = tpu.transpose %23, [0, 2, 1] : vector<1x8x256xf32> -> vector<1x256x8xf32>
    %c0_23 = arith.constant 0 : index
    %c0_24 = arith.constant 0 : index
    %c0_25 = arith.constant 0 : index
    %25 = vector.load %arg4[%c0_23, %c0_24, %c0_25] : memref<1x256x8xf32, #tpu.memory_space<vmem>>, vector<1x256x8xf32>
    tpu.vector_store %arg4[%c0_23, %c0_24, %c0_25], %24 {strides = array<i32>} : memref<1x256x8xf32, #tpu.memory_space<vmem>>, vector<1x256x8xf32>,
    return
  }
  func.func @transform_0(%arg0: i32) -> (i32, i32) {
    %c0_i32 = arith.constant 0 : i32
    %c0_i32_0 = arith.constant 0 : i32
    %c0_i32_1 = arith.constant 0 : i32
    return %c0_i32, %c0_i32_0 : i32, i32
  }
  func.func @transform_1(%arg0: i32) -> (i32, i32) {
    %c0_i32 = arith.constant 0 : i32
    %c0_i32_0 = arith.constant 0 : i32
    %c0_i32_1 = arith.constant 0 : i32
    return %c0_i32, %c0_i32_0 : i32, i32
  }
  func.func @transform_2(%arg0: i32) -> (i32, i32, i32) {
    %c0_i32 = arith.constant 0 : i32
    %c0_i32_0 = arith.constant 0 : i32
    %c0_i32_1 = arith.constant 0 : i32
    return %arg0, %c0_i32, %c0_i32_0 : i32, i32, i32
  }
  func.func @transform_3(%arg0: i32) -> (i32, i32, i32) {
    %c0_i32 = arith.constant 0 : i32
    %c0_i32_0 = arith.constant 0 : i32
    %c0_i32_1 = arith.constant 0 : i32
    return %arg0, %c0_i32, %c0_i32_0 : i32, i32, i32
  }
}

</mosaic_0001>

<llo_original>
// kernel: tpu_custom_call.1
$region0: #{tpu_custom_call.1}
  #allocation0 [shape = 'u32[]', space=smem, size = 0x4, offset = 0x4, fixed_abs, tag = 'smem constant byte address 0x4 - core index']
  #allocation1 [shape = 'u32[72,128]{1,0:T(1,128)}', space=vmem, size = 0x9000, scoped, tag = 'internal scratch']
  #allocation2 [shape = 'f32[1,8,256]{2,1,0:T(8,128)}', space=vmem, size = 0x2000, scoped, tag = 'scratch operand']
  %s0 = inlined_call_operand.vmem [shape: f32[2,256], index: 0, kind: input, shape index: {}]
  %s1 = inlined_call_operand.vmem [shape: f32[6,2], index: 1, kind: input, shape index: {}]
  %s2 = inlined_call_operand.hbm [shape: f32[6,8,256], index: 2, kind: input, shape index: {}]
  %s3 = inlined_call_operand.vmem [shape: f32[6,256,8], index: 3, kind: output, shape index: {}]
  %s4 = sld [smem:[#allocation0]]
  $region49: #{tpu_custom_call.1} parent=0
    _
  %s6 = ssub.s32 1, %s4
  %s7 = scalar_select 0, %s6, %s4
  $region1: #{tpu_custom_call.1} parent=0
    #allocation3 [shape = 'u8[16384]{0}', space=vmem, size = 0x4000, scoped, tag = 'input window, operand 2']
    #allocation4 [shape = 's32[2]{0}', space=sflag, size = 0x8, scoped, tag = 'scoped memory for tpu_custom_call.1']
    %8 = vsyncpa [#allocation4], 0
    %s9 = scalar_lea.sflag [#allocation4], 1
    %10 = vsyncpa %s9, 0
    loop: start=0, step=1, limit=8
    $region2: #{tpu_custom_call.1} parent=1 // loop_pre_header
      _
    $region3: #{tpu_custom_call.1} parent=1 // loop_header
      %s12 = sphi 0, %s16
      %p13 = scmp.ge.s32.totalorder %s12, 8
      %s20 = sphi 0, %s20
      %s22 = sphi 0, %s20
      %s23 = sphi 0, %s22
      %s37 = sphi 0, %s23
      %s41 = sphi 0, %s41
      %s43 = sphi 0, %s41
      %s44 = sphi 0, %s43
      %s58 = sphi 0, %s44
      %s64 = sphi 0, %s66
      %s67 = sphi 0, %s64
      %s68 = sphi 0, %s67
      %s84 = sphi 0, %s68
      %s90 = sphi 0, %s92
      %s93 = sphi 0, %s90
      %s94 = sphi 0, %s93
      %s110 = sphi 0, %s94
    $region4: #{tpu_custom_call.1} parent=1 // loop_header_branch
      %15 = sbr.rel (%p13) target = $region8
    $region5: #{tpu_custom_call.1} parent=1 // loop_body
      %s17 = ssub.s32 %s12, 1
      %s18 = ssub.s32 %s12, 2
      %s19 = sadd.s32 %s12, 1
      %s21 = sadd.s32 %s20, 1
      %p24 = scmp.eq.s32.totalorder %s12, 5
      %p25 = scmp.ne.s32.totalorder %s20, %s22
      %p26 = scmp.eq.s32.totalorder %s12, 0
      %p27 = por %p25, %p26
      %p28 = scmp.ne.s32.totalorder %s20, %s22
      %p29 = scmp.eq.s32.totalorder %s17, 5
      %p30 = por %p28, %p29
      %p31 = scmp.ne.s32.totalorder %s22, %s23
      %p32 = scmp.eq.s32.totalorder %s17, 0
      %p33 = por %p31, %p32
      %p34 = scmp.ne.s32.totalorder %s22, %s23
      %p35 = scmp.eq.s32.totalorder %s18, 5
      %p36 = por %p34, %p35
      %p38 = scmp.ne.s32.totalorder %s23, %s37
      %p39 = scmp.eq.s32.totalorder %s18, 0
      %p40 = por %p38, %p39
      %s42 = sadd.s32 %s41, 1
      %p45 = scmp.eq.s32.totalorder %s12, 5
      %p46 = scmp.ne.s32.totalorder %s41, %s43
      %p47 = scmp.eq.s32.totalorder %s12, 0
      %p48 = por %p46, %p47
      %p49 = scmp.ne.s32.totalorder %s41, %s43
      %p50 = scmp.eq.s32.totalorder %s17, 5
      %p51 = por %p49, %p50
      %p52 = scmp.ne.s32.totalorder %s43, %s44
      %p53 = scmp.eq.s32.totalorder %s17, 0
      %p54 = por %p52, %p53
      %p55 = scmp.ne.s32.totalorder %s43, %s44
      %p56 = scmp.eq.s32.totalorder %s18, 5
      %p57 = por %p55, %p56
      %p59 = scmp.ne.s32.totalorder %s44, %s58
      %p60 = scmp.eq.s32.totalorder %s18, 0
      %p61 = por %p59, %p60
      %s62 = ssub.s32 %s12, %s19
      %p63 = scmp.eq.s32.totalorder %s62, 0
      %s65 = sadd.s32 %s64, 1
      %s66 = scalar_select %p63, %s64, %s65
      %p69 = pneg %p63
      %p70 = scmp.eq.s32.totalorder %s12, 5
      %p71 = por %p69, %p70
      %p72 = scmp.ne.s32.totalorder %s64, %s67
      %p73 = scmp.eq.s32.totalorder %s12, 0
      %p74 = por %p72, %p73
      %p75 = scmp.ne.s32.totalorder %s64, %s67
      %p76 = scmp.eq.s32.totalorder %s17, 5
      %p77 = por %p75, %p76
      %p78 = scmp.ne.s32.totalorder %s67, %s68
      %p79 = scmp.eq.s32.totalorder %s17, 0
      %p80 = por %p78, %p79
      %p81 = scmp.ne.s32.totalorder %s67, %s68
      %p82 = scmp.eq.s32.totalorder %s18, 5
      %p83 = por %p81, %p82
      %p85 = scmp.ne.s32.totalorder %s68, %s84
      %p86 = scmp.eq.s32.totalorder %s18, 0
      %p87 = por %p85, %p86
      %s88 = ssub.s32 %s12, %s19
      %p89 = scmp.eq.s32.totalorder %s88, 0
      %s91 = sadd.s32 %s90, 1
      %s92 = scalar_select %p89, %s90, %s91
      %p95 = pneg %p89
      %p96 = scmp.eq.s32.totalorder %s12, 5
      %p97 = por %p95, %p96
      %p98 = scmp.ne.s32.totalorder %s90, %s93
      %p99 = scmp.eq.s32.totalorder %s12, 0
      %p100 = por %p98, %p99
      %p101 = scmp.ne.s32.totalorder %s90, %s93
      %p102 = scmp.eq.s32.totalorder %s17, 5
      %p103 = por %p101, %p102
      %p104 = scmp.ne.s32.totalorder %s93, %s94
      %p105 = scmp.eq.s32.totalorder %s17, 0
      %p106 = por %p104, %p105
      %p107 = scmp.ne.s32.totalorder %s93, %s94
      %p108 = scmp.eq.s32.totalorder %s18, 5
      %p109 = por %p107, %p108
      %p111 = scmp.ne.s32.totalorder %s94, %s110
      %p112 = scmp.eq.s32.totalorder %s18, 0
      %p113 = por %p111, %p112
      %p114 = scmp.le.s32.totalorder 1, %s12
      %p115 = scmp.lt.s32.totalorder %s12, 7
      %p116 = pnand %p114, %p115
      %p117 = pneg %p116
      // Predicated region
      $region9: #{tpu_custom_call.1} parent=5 // pred_check
        _
      $region10: #{tpu_custom_call.1} parent=5 // pred_check_branch
        %119 = sbr.rel (%p116) target = $region12
      $region11: #{tpu_custom_call.1} parent=5 // pred_region
        %s120 = ssub.s32 %s12, 1
        // Predicated region
        $region13: #{tpu_custom_call.1} parent=11 // pred_check
          %p121 = pneg %p33
        $region14: #{tpu_custom_call.1} parent=11 // pred_check_branch
          %123 = sbr.rel (%p121) target = $region16
        $region15: #{tpu_custom_call.1} parent=11 // pred_region
          _
        $region16: #{tpu_custom_call.1} parent=11 // pred_fallthru
          _
        // Predicated region
        $region17: #{tpu_custom_call.1} parent=11 // pred_check
          %p124 = pneg %p54
        $region18: #{tpu_custom_call.1} parent=11 // pred_check_branch
          %126 = sbr.rel (%p124) target = $region20
        $region19: #{tpu_custom_call.1} parent=11 // pred_region
          _
        $region20: #{tpu_custom_call.1} parent=11 // pred_fallthru
          _
      $region12: #{tpu_custom_call.1} parent=5 // pred_fallthru
        _
      %p127 = scmp.lt.s32.totalorder %s12, 6
      // Predicated region
      $region21: #{tpu_custom_call.1} parent=5 // pred_check
        %p128 = pneg %p127
      $region22: #{tpu_custom_call.1} parent=5 // pred_check_branch
        %130 = sbr.rel (%p128) target = $region24
      $region23: #{tpu_custom_call.1} parent=5 // pred_region
        // Predicated region
        $region25: #{tpu_custom_call.1} parent=23 // pred_check
          %p131 = pneg %p74
        $region26: #{tpu_custom_call.1} parent=23 // pred_check_branch
          %133 = sbr.rel (%p131) target = $region28
        $region27: #{tpu_custom_call.1} parent=23 // pred_region
          %s134 = sand.u32 %s64, 1
          %s135 = scalar_lea.sflag [#allocation4], %s134
          %s136 = sand.u32 %s64, 1
          %s137 = smul.addr %s136, 16
          %s138 = scalar_lea.vmem [#allocation3], %s137
          %140 = vsyncadd %s135, 0
          %s141 = smul.addr %s12, 2
          %s142 = smul.addr %s141, 8
          %s143 = scalar_lea.hbm %s2, %s142
          %s145 = sshll.u32 %s143, 4
          %s146 = int_to_ptr.hbm [resolvable:$true] %s145
          %s147 = sshll.u32 %s138, 4
          %s148 = int_to_ptr.vmem [resolvable:$true] %s147
          %150 = dma.hbm_to_vmem [thread:$0]  %s146, 256, %s148, %s135
        $region28: #{tpu_custom_call.1} parent=23 // pred_fallthru
          _
      $region24: #{tpu_custom_call.1} parent=5 // pred_fallthru
        _
      %p151 = scmp.le.s32.totalorder 1, %s12
      %p152 = scmp.lt.s32.totalorder %s12, 7
      %p153 = pnand %p151, %p152
      %p154 = pneg %p153
      // Predicated region
      $region29: #{tpu_custom_call.1} parent=5 // pred_check
        _
      $region30: #{tpu_custom_call.1} parent=5 // pred_check_branch
        %156 = sbr.rel (%p153) target = $region32
      $region31: #{tpu_custom_call.1} parent=5 // pred_region
        %s157 = ssub.s32 %s12, 1
        %s158 = sand.u32 %s67, 1
        %s159 = scalar_lea.sflag [#allocation4], %s158
        %s160 = sand.u32 %s67, 1
        %s161 = smul.addr %s160, 16
        %s162 = scalar_lea.vmem [#allocation3], %s161
        // Predicated region
        $region33: #{tpu_custom_call.1} parent=31 // pred_check
          %p163 = pneg %p80
        $region34: #{tpu_custom_call.1} parent=31 // pred_check_branch
          %165 = sbr.rel (%p163) target = $region36
        $region35: #{tpu_custom_call.1} parent=31 // pred_region
          %167 = dma.done %s159, 256
        $region36: #{tpu_custom_call.1} parent=31 // pred_fallthru
          _
        %p168 = pneg %p33
        %p169 = pneg %p30
        %p170 = pneg %p54
        %p171 = pneg %p51
        %s172 = sand.u32 %s67, 1
        %s173 = scalar_lea.sflag [#allocation4], %s172
        %s174 = sand.u32 %s67, 1
        %s175 = smul.addr %s174, 16
        %s176 = scalar_lea.vmem [#allocation3], %s175
        %p177 = pneg %p80
        %p178 = pneg %p77
        %p179 = pneg %p106
        %p180 = pneg %p103
        %p181 = scmp.lt.s32.totalorder %s17, 5
        %s182 = scalar_select %p181, %s17, 5
        %s183 = smul.addr %s182, 32
        %s184 = smul.addr %s183, 8
        %s185 = scalar_lea.vmem %s3, %s184
        %p186 = scmp.lt.s32.totalorder %s17, 5
        %s187 = scalar_select %p186, %s17, 5
        %s188 = smul.addr %s187, 32
        %s189 = smul.addr %s188, 8
        %s190 = scalar_lea.vmem %s3, %s189
        %v191 = vld [vmem:[%s162] sm:$0xff]
        %v192 = vld [vmem:[%s162 + $0x8] sm:$0xff]
        %v193 = vxor.u32 %v191, 2147483648
        %v194 = vxor.u32 %v192, 2147483648
        %v195 = vmul.f32 %v193, 1.442695
        %v196 = vpow.pop %v195
        %v197 = vmul.f32 %v194, 1.442695
        %v198 = vpow.pop %v197
        %v199 = vadd.f32 %v196, 1.0
        %v200 = vadd.f32 %v198, 1.0
        %v201 = vrcp.pop %v199
        %v202 = vmul.f32 %v199, %v201
        %v203 = vsub.f32 1.0, %v202
        %v204 = vmul.f32 %v201, %v203
        %v205 = vadd.f32 %v201, %v204
        %vm206 = vweird.f32 %v199
        %vm207 = vweird.f32 %v201
        %vm208 = vmor %vm206, %vm207
        %v209 = vsel %vm208, %v201, %v205
        %v210 = vand.u32 2147483647, %v199
        %vm211 = vcmp.eq.f32.partialorder %v210, 8.507059e+37
        %v212 = vand.u32 %v199, 2147483648
        %v213 = vor.u32 1.1754944e-38, %v212
        %v214 = vsel %vm211, %v213, %v209
        %v215 = vmul.f32 1.0, %v214
        %v216 = vrcp.pop %v200
        %v217 = vmul.f32 %v200, %v216
        %v218 = vsub.f32 1.0, %v217
        %v219 = vmul.f32 %v216, %v218
        %v220 = vadd.f32 %v216, %v219
        %vm221 = vweird.f32 %v200
        %vm222 = vweird.f32 %v216
        %vm223 = vmor %vm221, %vm222
        %v224 = vsel %vm223, %v216, %v220
        %v225 = vand.u32 2147483647, %v200
        %vm226 = vcmp.eq.f32.partialorder %v225, 8.507059e+37
        %v227 = vand.u32 %v200, 2147483648
        %v228 = vor.u32 1.1754944e-38, %v227
        %v229 = vsel %vm226, %v228, %v224
        %v230 = vmul.f32 1.0, %v229
        %231 = vst [vmem:[#allocation2] sm:$0xff] %v215
        %232 = vst [vmem:[#allocation2 + $0x8] sm:$0xff] %v230
        %v233 = vld [vmem:[#allocation2] sm:$0x3]
        %v234 = vld [vmem:[#allocation2 + $0x8] sm:$0x3]
        %v235 = vld [vmem:[%s0] sm:$0xf]
        %237 = vst [vmem:[#allocation1] ss:$4 sm:$0xff] %v235
        %v238 = vld.sshfl [vmem:[#allocation1] sm:$0xff pattern:$0x73625140]
        %v239 = vld.sshfl [vmem:[#allocation1 + $0x8] sm:$0xff pattern:$0x73625140]
        %v242 = vadd.f32 %v233, %v238
        %v243 = vadd.f32 %v234, %v239
        %v244 = vmul.f32 %v242, 4.0
        %v245 = vmul.f32 %v243, 4.0
        %246 = vst [vmem:[#allocation2] sm:$0x3] %v244
        %247 = vst [vmem:[#allocation2 + $0x8] sm:$0x3] %v245
        %s248 = scalar_lea.vmem %s1, %s17
        %v249 = vld [vmem:[%s248] sm:$0x1]
        %v250 = vld [vmem:[%s162] sm:$0xc]
        %v251 = vld [vmem:[%s162 + $0x8] sm:$0xc]
        %v252 = vmul.f32 %v250, 1.442695
        %v253 = vpow.pop %v252
        %v254 = vmul.f32 %v251, 1.442695
        %v255 = vpow.pop %v254
        %v256 = vperm.slane %v249, 0
        %v257 = vlaneseq
        %v258 = vshrl.u32 %v257, 7
        %260 = vset.pattern.permute.xlu0 %v258
        %261 = vperm.xlu0 %260, %v256
        %v262 = vpop.permute.xlu0 %261
        %v264 = vrot.slane %v262, 6
        %v266 = vmul.f32 %v253, %v264
        %v267 = vmul.f32 %v255, %v264
        %268 = vst [vmem:[#allocation2] sm:$0xc] %v266
        %269 = vst [vmem:[#allocation2 + $0x8] sm:$0xc] %v267
        %v270 = vld [vmem:[#allocation2] sm:$0xff]
        %v271 = vld [vmem:[#allocation2 + $0x8] sm:$0xff]
        %272 = vxpose.xlu0.b32.start [1/16] %v270, 128
        %273 = vxpose.xlu0.b32.cont [2/16] 0.0, 128
        %274 = vxpose.xlu0.b32.cont [3/16] 0.0, 128
        %275 = vxpose.xlu0.b32.cont [4/16] 0.0, 128
        %276 = vxpose.xlu0.b32.cont [5/16] 0.0, 128
        %277 = vxpose.xlu0.b32.cont [6/16] 0.0, 128
        %278 = vxpose.xlu0.b32.cont [7/16] 0.0, 128
        %279 = vxpose.xlu0.b32.cont [8/16] 0.0, 128
        %280 = vxpose.xlu0.b32.cont [9/16] 0.0, 128
        %281 = vxpose.xlu0.b32.cont [10/16] 0.0, 128
        %282 = vxpose.xlu0.b32.cont [11/16] 0.0, 128
        %283 = vxpose.xlu0.b32.cont [12/16] 0.0, 128
        %284 = vxpose.xlu0.b32.cont [13/16] 0.0, 128
        %285 = vxpose.xlu0.b32.cont [14/16] 0.0, 128
        %286 = vxpose.xlu0.b32.cont [15/16] 0.0, 128
        %287 = vxpose.xlu0.b32.end [16/16] 0.0, 128
        %v288 = vpop.trf.xlu0
        %v289 = vpop.trf.xlu0
        %v290 = vpop.trf.xlu0
        %v291 = vpop.trf.xlu0
        %v292 = vpop.trf.xlu0
        %v293 = vpop.trf.xlu0
        %v294 = vpop.trf.xlu0
        %v295 = vpop.trf.xlu0
        %v296 = vpop.trf.xlu0
        %v297 = vpop.trf.xlu0
        %v298 = vpop.trf.xlu0
        %v299 = vpop.trf.xlu0
        %v300 = vpop.trf.xlu0
        %v301 = vpop.trf.xlu0
        %v302 = vpop.trf.xlu0
        %v303 = vpop.trf.xlu0
        %304 = vxpose.xlu0.b32.start [1/16] %v271, 128
        %305 = vxpose.xlu0.b32.cont [2/16] 0.0, 128
        %306 = vxpose.xlu0.b32.cont [3/16] 0.0, 128
        %307 = vxpose.xlu0.b32.cont [4/16] 0.0, 128
        %308 = vxpose.xlu0.b32.cont [5/16] 0.0, 128
        %309 = vxpose.xlu0.b32.cont [6/16] 0.0, 128
        %310 = vxpose.xlu0.b32.cont [7/16] 0.0, 128
        %311 = vxpose.xlu0.b32.cont [8/16] 0.0, 128
        %312 = vxpose.xlu0.b32.cont [9/16] 0.0, 128
        %313 = vxpose.xlu0.b32.cont [10/16] 0.0, 128
        %314 = vxpose.xlu0.b32.cont [11/16] 0.0, 128
        %315 = vxpose.xlu0.b32.cont [12/16] 0.0, 128
        %316 = vxpose.xlu0.b32.cont [13/16] 0.0, 128
        %317 = vxpose.xlu0.b32.cont [14/16] 0.0, 128
        %318 = vxpose.xlu0.b32.cont [15/16] 0.0, 128
        %319 = vxpose.xlu0.b32.end [16/16] 0.0, 128
        %v320 = vpop.trf.xlu0
        %v321 = vpop.trf.xlu0
        %v322 = vpop.trf.xlu0
        %v323 = vpop.trf.xlu0
        %v324 = vpop.trf.xlu0
        %v325 = vpop.trf.xlu0
        %v326 = vpop.trf.xlu0
        %v327 = vpop.trf.xlu0
        %v328 = vpop.trf.xlu0
        %v329 = vpop.trf.xlu0
        %v330 = vpop.trf.xlu0
        %v331 = vpop.trf.xlu0
        %v332 = vpop.trf.xlu0
        %v333 = vpop.trf.xlu0
        %v334 = vpop.trf.xlu0
        %v335 = vpop.trf.xlu0
        %vm336 = vcmask 64512
        %337 = vst.msk [vmem:[%s190] sm:$0xff] %vm336, %v288
        %338 = vst.msk [vmem:[%s190 + $0x8] sm:$0xff] %vm336, %v289
        %339 = vst.msk [vmem:[%s190 + $0x10] sm:$0xff] %vm336, %v290
        %340 = vst.msk [vmem:[%s190 + $0x18] sm:$0xff] %vm336, %v291
        %341 = vst.msk [vmem:[%s190 + $0x20] sm:$0xff] %vm336, %v292
        %342 = vst.msk [vmem:[%s190 + $0x28] sm:$0xff] %vm336, %v293
        %343 = vst.msk [vmem:[%s190 + $0x30] sm:$0xff] %vm336, %v294
        %344 = vst.msk [vmem:[%s190 + $0x38] sm:$0xff] %vm336, %v295
        %345 = vst.msk [vmem:[%s190 + $0x40] sm:$0xff] %vm336, %v296
        %346 = vst.msk [vmem:[%s190 + $0x48] sm:$0xff] %vm336, %v297
        %347 = vst.msk [vmem:[%s190 + $0x50] sm:$0xff] %vm336, %v298
        %348 = vst.msk [vmem:[%s190 + $0x58] sm:$0xff] %vm336, %v299
        %349 = vst.msk [vmem:[%s190 + $0x60] sm:$0xff] %vm336, %v300
        %350 = vst.msk [vmem:[%s190 + $0x68] sm:$0xff] %vm336, %v301
        %351 = vst.msk [vmem:[%s190 + $0x70] sm:$0xff] %vm336, %v302
        %352 = vst.msk [vmem:[%s190 + $0x78] sm:$0xff] %vm336, %v303
        %353 = vst.msk [vmem:[%s190 + $0x80] sm:$0xff] %vm336, %v320
        %354 = vst.msk [vmem:[%s190 + $0x88] sm:$0xff] %vm336, %v321
        %355 = vst.msk [vmem:[%s190 + $0x90] sm:$0xff] %vm336, %v322
        %356 = vst.msk [vmem:[%s190 + $0x98] sm:$0xff] %vm336, %v323
        %357 = vst.msk [vmem:[%s190 + $0xa0] sm:$0xff] %vm336, %v324
        %358 = vst.msk [vmem:[%s190 + $0xa8] sm:$0xff] %vm336, %v325
        %359 = vst.msk [vmem:[%s190 + $0xb0] sm:$0xff] %vm336, %v326
        %360 = vst.msk [vmem:[%s190 + $0xb8] sm:$0xff] %vm336, %v327
        %361 = vst.msk [vmem:[%s190 + $0xc0] sm:$0xff] %vm336, %v328
        %362 = vst.msk [vmem:[%s190 + $0xc8] sm:$0xff] %vm336, %v329
        %363 = vst.msk [vmem:[%s190 + $0xd0] sm:$0xff] %vm336, %v330
        %364 = vst.msk [vmem:[%s190 + $0xd8] sm:$0xff] %vm336, %v331
        %365 = vst.msk [vmem:[%s190 + $0xe0] sm:$0xff] %vm336, %v332
        %366 = vst.msk [vmem:[%s190 + $0xe8] sm:$0xff] %vm336, %v333
        %367 = vst.msk [vmem:[%s190 + $0xf0] sm:$0xff] %vm336, %v334
        %368 = vst.msk [vmem:[%s190 + $0xf8] sm:$0xff] %vm336, %v335
        %p369 = scmp.lt.s32.totalorder %s17, 5
        %s370 = scalar_select %p369, %s17, 5
        %s371 = smul.addr %s370, 32
        %s372 = smul.addr %s371, 8
        %s373 = scalar_lea.vmem %s3, %s372
        // Predicated region
        $region37: #{tpu_custom_call.1} parent=31 // pred_check
          %p374 = pneg %p103
        $region38: #{tpu_custom_call.1} parent=31 // pred_check_branch
          %376 = sbr.rel (%p374) target = $region40
        $region39: #{tpu_custom_call.1} parent=31 // pred_region
          _
        $region40: #{tpu_custom_call.1} parent=31 // pred_fallthru
          _
      $region32: #{tpu_custom_call.1} parent=5 // pred_fallthru
        _
      %p377 = scmp.le.s32.totalorder 2, %s12
      // Predicated region
      $region41: #{tpu_custom_call.1} parent=5 // pred_check
        %p378 = pneg %p377
      $region42: #{tpu_custom_call.1} parent=5 // pred_check_branch
        %380 = sbr.rel (%p378) target = $region44
      $region43: #{tpu_custom_call.1} parent=5 // pred_region
        %s381 = ssub.s32 %s12, 2
        // Predicated region
        $region45: #{tpu_custom_call.1} parent=43 // pred_check
          %p382 = pneg %p109
        $region46: #{tpu_custom_call.1} parent=43 // pred_check_branch
          %384 = sbr.rel (%p382) target = $region48
        $region47: #{tpu_custom_call.1} parent=43 // pred_region
          %p385 = scmp.lt.s32.totalorder %s18, 5
          %s386 = scalar_select %p385, %s18, 5
          %s387 = smul.addr %s386, 32
          %s388 = smul.addr %s387, 8
          %s389 = scalar_lea.vmem %s3, %s388
        $region48: #{tpu_custom_call.1} parent=43 // pred_fallthru
          _
      $region44: #{tpu_custom_call.1} parent=5 // pred_fallthru
        _
    $region6: #{tpu_custom_call.1} parent=1 // loop_footer
      %s16 = sadd.s32 1, %s12
    $region7: #{tpu_custom_call.1} parent=1 // loop_footer_branch
      %11 = sbr.rel target = $region3
    $region8: #{tpu_custom_call.1} parent=1 // loop_exit
      _
    %390 = vsyncpa [#allocation4], 1
    %s391 = scalar_lea.sflag [#allocation4], 1
    %392 = vsyncpa %s391, 1

</llo_original>
